<compile_context>
chip_gen: v6e
topology: v6e:2x2x1
jax: 0.10.0
libtpu: 0.0.40
codegen_flags: <defaults>
</compile_context>

<pallas_src>
import functools
import math

import jax
import jax.numpy as jnp
from jax.experimental import pallas as pl
from jax.experimental.pallas import tpu as pltpu

# ---- small synthetic hyper-params (mirroring a tiny BERT) ----
VOCAB = 64
TYPE_VOCAB = 2
MAX_POS = 16
HIDDEN = 32
N_HEADS = 4
HEAD_DIM = HIDDEN // N_HEADS
N_LAYERS = 2
INTERMEDIATE = 64
N_CLASSES = 4
LN_EPS = 1e-12

# Row tile for M = B*S gridded kernels (256-aligned for v6e/v7x MXU; use 128 on v5e).
ROW_TILE = 256
# q-block tile for attention: bounds the per-head score tile to [Q_TILE, S].
Q_TILE = 256


def _pick_tile(m, cap):
    """Largest sublane-aligned tile <= cap; non-divisible m handled by cdiv grid + masked tail."""
    if m >= cap:
        return cap
    return m if m % 8 == 0 else min(cap, ((m + 7) // 8) * 8)


def _full_spec(shape):
    return pl.BlockSpec(shape, lambda: (0,) * len(shape))


def _gelu_exact(x):
    # exact erf GELU (matches HF BERT "gelu"), computed in f32 vregs.
    return 0.5 * x * (1.0 + jax.lax.erf(x * 0.7071067811865476))


def _layernorm(y, g, b):
    mu = jnp.mean(y, axis=-1, keepdims=True)
    yc = y - mu
    var = jnp.mean(yc * yc, axis=-1, keepdims=True)
    inv = jax.lax.rsqrt(var + LN_EPS)
    return yc * inv * g + b


# ---------------- Pallas kernels ----------------

def _ln_kernel(x_ref, g_ref, b_ref, o_ref):
    x = x_ref[...].astype(jnp.float32)
    o_ref[...] = _layernorm(x, g_ref[...], b_ref[...]).astype(o_ref.dtype)


def _ffn_res_ln_kernel(x_ref, wi_ref, bi_ref, wo_ref, bo_ref, g_ref, bb_ref, o_ref):
    # fc1 + exact GELU + fc2 + residual + LayerNorm, intermediate stays resident in VMEM.
    x = x_ref[...]
    h1 = jnp.dot(x, wi_ref[...], preferred_element_type=jnp.float32) + bi_ref[...]
    h1 = _gelu_exact(h1)
    y = jnp.dot(h1.astype(wo_ref.dtype), wo_ref[...],
                preferred_element_type=jnp.float32) + bo_ref[...]
    y = y + x.astype(jnp.float32)
    o_ref[...] = _layernorm(y, g_ref[...], bb_ref[...]).astype(o_ref.dtype)


def _attn_block_kernel(xf_ref, xq_ref, mask_ref,
                       wq_ref, wk_ref, wv_ref, bq_ref, bk_ref, bv_ref,
                       wo_ref, bo_ref, g_ref, bb_ref,
                       o_ref, *rest, scale, want_probs):
    """Grid = (batch, q_block, head).  One head of one q-block per step: Q/K/V projection,
    softmax(QK^T*scale + mask), P@V, per-head output projection accumulated over the head
    axis; residual + LayerNorm applied at the last head."""
    if want_probs:
        prob_ref, acc_ref = rest
    else:
        (acc_ref,) = rest

    h = pl.program_id(2)
    n_heads = pl.num_programs(2)

    @pl.when(h == 0)
    def _():
        acc_ref[...] = jnp.zeros_like(acc_ref)

    xq = xq_ref[0]                                       # [TQ, H]  q rows + residual
    xf = xf_ref[0]                                       # [S,  H]  key/value source

    q = (jnp.dot(xq, wq_ref[0], preferred_element_type=jnp.float32)
         + bq_ref[0]) * scale                            # fold 1/sqrt(dH) into Q (O(TQ*dH))
    k = jnp.dot(xf, wk_ref[0], preferred_element_type=jnp.float32) + bk_ref[0]
    v = jnp.dot(xf, wv_ref[0], preferred_element_type=jnp.float32) + bv_ref[0]

    s = jax.lax.dot_general(q, k, (((1,), (1,)), ((), ())),
                            preferred_element_type=jnp.float32)       # [TQ, S]
    s = s + mask_ref[0]                                  # [1, S] additive mask, broadcast
    mx = jnp.max(s, axis=-1, keepdims=True)
    e = jnp.exp(s - mx)
    den = jnp.sum(e, axis=-1, keepdims=True)
    if want_probs:
        p = e / den                                      # exact: probs are returned to user
        prob_ref[0, 0] = p.astype(prob_ref.dtype)
    else:
        p = e * pl.reciprocal(den, approx=True)          # EUP reciprocal for internal layers

    ctx = jnp.dot(p.astype(v.dtype), v, preferred_element_type=jnp.float32)     # [TQ, dH]
    acc_ref[...] += jnp.dot(ctx.astype(wo_ref.dtype), wo_ref[0],
                            preferred_element_type=jnp.float32)                 # [TQ, H]

    @pl.when(h == n_heads - 1)
    def _():
        y = acc_ref[...] + bo_ref[...] + xq.astype(jnp.float32)   # out-proj bias + residual
        o_ref[0] = _layernorm(y, g_ref[...], bb_ref[...]).astype(o_ref.dtype)


def _pooler_head_kernel(cls_ref, pw_ref, pb_ref, fw_ref, fb_ref, o_ref):
    # BERT pooler (tanh on CLS) + dropout(identity) + fc(H->4) + exact softmax(dim=1), fused.
    pooled = jnp.tanh(jnp.dot(cls_ref[...], pw_ref[...],
                              preferred_element_type=jnp.float32) + pb_ref[...])
    logits = jnp.dot(pooled.astype(fw_ref.dtype), fw_ref[...],
                     preferred_element_type=jnp.float32) + fb_ref[...]
    mx = jnp.max(logits, axis=-1, keepdims=True)
    e = jnp.exp(logits - mx)
    o_ref[...] = (e / jnp.sum(e, axis=-1, keepdims=True)).astype(o_ref.dtype)


# ---------------- gridded wrappers ----------------

def pallas_layernorm(x2d, gamma, beta):
    M, H = x2d.shape
    tm = _pick_tile(M, ROW_TILE)
    return pl.pallas_call(
        _ln_kernel,
        out_shape=jax.ShapeDtypeStruct((M, H), x2d.dtype),
        grid=(pl.cdiv(M, tm),),
        in_specs=[pl.BlockSpec((tm, H), lambda i: (i, 0)),
                  pl.BlockSpec((1, H), lambda i: (0, 0)),
                  pl.BlockSpec((1, H), lambda i: (0, 0))],
        out_specs=pl.BlockSpec((tm, H), lambda i: (i, 0)),
        compiler_params=pltpu.CompilerParams(dimension_semantics=("parallel",)),
    )(x2d, gamma.reshape(1, H), beta.reshape(1, H))


def pallas_ffn_residual_ln(x2d, wi, bi, wo, bo, gamma, beta):
    M, H = x2d.shape
    I = wi.shape[1]
    tm = _pick_tile(M, ROW_TILE)
    return pl.pallas_call(
        _ffn_res_ln_kernel,
        out_shape=jax.ShapeDtypeStruct((M, H), x2d.dtype),
        grid=(pl.cdiv(M, tm),),
        in_specs=[pl.BlockSpec((tm, H), lambda i: (i, 0)),
                  pl.BlockSpec((H, I), lambda i: (0, 0)),
                  pl.BlockSpec((1, I), lambda i: (0, 0)),
                  pl.BlockSpec((I, H), lambda i: (0, 0)),
                  pl.BlockSpec((1, H), lambda i: (0, 0)),
                  pl.BlockSpec((1, H), lambda i: (0, 0)),
                  pl.BlockSpec((1, H), lambda i: (0, 0))],
        out_specs=pl.BlockSpec((tm, H), lambda i: (i, 0)),
        compiler_params=pltpu.CompilerParams(dimension_semantics=("parallel",)),
    )(x2d, wi, bi.reshape(1, I), wo, bo.reshape(1, H),
      gamma.reshape(1, H), beta.reshape(1, H))
    # TODO(synk): input_output_aliases={0: 0} to reuse the residual buffer at real sizes.


def pallas_attention_block(x_bsh, add_mask, lp, want_probs):
    """Fused QKV projection + MHA + output projection + residual + LayerNorm.
    x_bsh: [B, S, H]; add_mask: [B, 1, S] additive mask."""
    B, S, H = x_bsh.shape
    tq = _pick_tile(S, Q_TILE)
    grid = (B, pl.cdiv(S, tq), N_HEADS)
    kernel = functools.partial(_attn_block_kernel,
                               scale=1.0 / math.sqrt(HEAD_DIM), want_probs=want_probs)

    in_specs = [
        pl.BlockSpec((1, S, H), lambda b, qi, h: (b, 0, 0)),            # x full seq (K/V)
        pl.BlockSpec((1, tq, H), lambda b, qi, h: (b, qi, 0)),          # x q rows / residual
        pl.BlockSpec((1, 1, S), lambda b, qi, h: (b, 0, 0)),            # additive mask
        pl.BlockSpec((1, H, HEAD_DIM), lambda b, qi, h: (h, 0, 0)),     # wq  [nH, H, dH]
        pl.BlockSpec((1, H, HEAD_DIM), lambda b, qi, h: (h, 0, 0)),     # wk
        pl.BlockSpec((1, H, HEAD_DIM), lambda b, qi, h: (h, 0, 0)),     # wv
        pl.BlockSpec((1, 1, HEAD_DIM), lambda b, qi, h: (h, 0, 0)),     # bq  [nH, 1, dH]
        pl.BlockSpec((1, 1, HEAD_DIM), lambda b, qi, h: (h, 0, 0)),     # bk
        pl.BlockSpec((1, 1, HEAD_DIM), lambda b, qi, h: (h, 0, 0)),     # bv
        pl.BlockSpec((1, HEAD_DIM, H), lambda b, qi, h: (h, 0, 0)),     # wo  [nH, dH, H]
        pl.BlockSpec((1, H), lambda b, qi, h: (0, 0)),                  # bo
        pl.BlockSpec((1, H), lambda b, qi, h: (0, 0)),                  # ln1 gamma
        pl.BlockSpec((1, H), lambda b, qi, h: (0, 0)),                  # ln1 beta
    ]
    out_shape = jax.ShapeDtypeStruct((B, S, H), x_bsh.dtype)
    out_specs = pl.BlockSpec((1, tq, H), lambda b, qi, h: (b, qi, 0))
    if want_probs:
        # TODO(synk): at real sizes store probs as bf16 (halves O(S^2) writeback / v7x VMEM).
        out_shape = (out_shape, jax.ShapeDtypeStruct((B, N_HEADS, S, S), jnp.float32))
        out_specs = (out_specs,
                     pl.BlockSpec((1, 1, tq, S), lambda b, qi, h: (b, h, qi, 0)))

    return pl.pallas_call(
        kernel,
        out_shape=out_shape,
        grid=grid,
        in_specs=in_specs,
        out_specs=out_specs,
        scratch_shapes=[pltpu.VMEM((tq, H), jnp.float32)],
        compiler_params=pltpu.CompilerParams(
            dimension_semantics=("parallel", "parallel", "arbitrary")),
    )(x_bsh, x_bsh, add_mask,
      lp["wq"], lp["wk"], lp["wv"], lp["bq"], lp["bk"], lp["bv"],
      lp["wo"], lp["bo"].reshape(1, H), lp["ln1_g"].reshape(1, H), lp["ln1_b"].reshape(1, H))


def pallas_pooler_head(cls2d, pool_w, pool_b, fc_w, fc_b):
    B, H = cls2d.shape
    C = fc_w.shape[1]
    return pl.pallas_call(
        _pooler_head_kernel,
        out_shape=jax.ShapeDtypeStruct((B, C), cls2d.dtype),
        in_specs=[_full_spec((B, H)), _full_spec((H, H)), _full_spec((1, H)),
                  _full_spec((H, C)), _full_spec((1, C))],
        out_specs=_full_spec((B, C)),
    )(cls2d, pool_w, pool_b.reshape(1, H), fc_w, fc_b.reshape(1, C))


# ---------------- parameter init (deterministic, synthetic) ----------------

def init_params(key):
    keys = jax.random.split(key, 8 + N_LAYERS * 8)
    kit = iter(keys)

    def w(shape):
        return jax.random.normal(next(kit), shape, jnp.float32) * 0.02

    params = {
        "word_emb": w((VOCAB, HIDDEN)),
        "pos_emb": w((MAX_POS, HIDDEN)),
        "type_emb": w((TYPE_VOCAB, HIDDEN)),
        "emb_ln_g": jnp.ones((HIDDEN,), jnp.float32),
        "emb_ln_b": jnp.zeros((HIDDEN,), jnp.float32),
        "layers": [],
        "pool_w": w((HIDDEN, HIDDEN)),
        "pool_b": jnp.zeros((HIDDEN,), jnp.float32),
        "fc_w": w((HIDDEN, N_CLASSES)),
        "fc_b": jnp.zeros((N_CLASSES,), jnp.float32),
    }

    def per_head_in(wmat):  # [H, H] -> [n_heads, H, d_head] (output features, head-major)
        return wmat.reshape(HIDDEN, N_HEADS, HEAD_DIM).transpose(1, 0, 2)

    for _ in range(N_LAYERS):
        wq, wk, wv, wo = w((HIDDEN, HIDDEN)), w((HIDDEN, HIDDEN)), w((HIDDEN, HIDDEN)), w((HIDDEN, HIDDEN))
        params["layers"].append({
            "wq": per_head_in(wq), "wk": per_head_in(wk), "wv": per_head_in(wv),
            "bq": jnp.zeros((N_HEADS, 1, HEAD_DIM), jnp.float32),
            "bk": jnp.zeros((N_HEADS, 1, HEAD_DIM), jnp.float32),
            "bv": jnp.zeros((N_HEADS, 1, HEAD_DIM), jnp.float32),
            "wo": wo.reshape(N_HEADS, HEAD_DIM, HIDDEN),        # [n_heads, d_head, H]
            "bo": jnp.zeros((HIDDEN,), jnp.float32),
            "ln1_g": jnp.ones((HIDDEN,), jnp.float32),
            "ln1_b": jnp.zeros((HIDDEN,), jnp.float32),
            "wi": w((HIDDEN, INTERMEDIATE)), "bi": jnp.zeros((INTERMEDIATE,), jnp.float32),
            "wo2": w((INTERMEDIATE, HIDDEN)), "bo2": jnp.zeros((HIDDEN,), jnp.float32),
            "ln2_g": jnp.ones((HIDDEN,), jnp.float32),
            "ln2_b": jnp.zeros((HIDDEN,), jnp.float32),
        })
    return params


# ---------------- forward (matches Kcbert.forward semantics) ----------------

def kcbert_forward(params, input_ids, attention_mask, token_type_ids, stage="eval"):
    B, S = input_ids.shape
    H = HIDDEN

    # BERT embeddings (gathers stay as JAX glue) + LayerNorm (Pallas).
    pos_ids = jnp.arange(S)
    emb = (params["word_emb"][input_ids]
           + params["pos_emb"][pos_ids][None, :, :]
           + params["type_emb"][token_type_ids])
    h = pallas_layernorm(emb.reshape(B * S, H), params["emb_ln_g"], params["emb_ln_b"])
    # TODO(synk): nn.Dropout(0.3) and BERT-internal dropouts are identity (inference semantics).

    add_mask = ((1.0 - attention_mask.astype(jnp.float32)) * -10000.0)[:, None, :]  # [B,1,S]

    attn_probs = None
    n_layers = len(params["layers"])
    for li, lp in enumerate(params["layers"]):
        # attention probs only materialized for the last layer (the only one returned)
        want_probs = (li == n_layers - 1) and (stage != "train")
        if want_probs:
            h3, attn_probs = pallas_attention_block(h.reshape(B, S, H), add_mask, lp, True)
        else:
            h3 = pallas_attention_block(h.reshape(B, S, H), add_mask, lp, False)
        # fc1 + GELU + fc2 + residual + LN2 (fused)
        h = pallas_ffn_residual_ln(h3.reshape(B * S, H), lp["wi"], lp["bi"],
                                   lp["wo2"], lp["bo2"], lp["ln2_g"], lp["ln2_b"])

    # BERT pooler (tanh on CLS) -> dropout (identity) -> fc -> softmax(dim=1), fused head.
    cls = h.reshape(B, S, H)[:, 0, :]
    out = pallas_pooler_head(cls, params["pool_w"], params["pool_b"],
                             params["fc_w"], params["fc_b"])

    if stage == "train":
        return {"output": out}
    return {"output": out, "attn_prob": attn_probs}   # attn_probs[-1] of the last layer


if __name__ == "__main__":
    key = jax.random.PRNGKey(0)
    pkey, ikey, tkey = jax.random.split(key, 3)

    params = init_params(pkey)

    B, S = 2, 8
    input_ids = jax.random.randint(ikey, (B, S), 0, VOCAB, dtype=jnp.int32)
    token_type_ids = jax.random.randint(tkey, (B, S), 0, TYPE_VOCAB, dtype=jnp.int32)
    attention_mask = jnp.concatenate(
        [jnp.ones((B, S - 2), jnp.int32), jnp.zeros((B, 2), jnp.int32)], axis=1)

    out_dict = kcbert_forward(params, input_ids, attention_mask,
                              token_type_ids, stage="eval")
    out = jax.block_until_ready(out_dict["output"])
    probs = jax.block_until_ready(out_dict["attn_prob"])

    assert out.shape == (B, N_CLASSES)
    assert probs.shape == (B, N_HEADS, S, S)
    # exact-softmax outputs: rows must sum to ~1 and be finite
    assert bool(jnp.all(jnp.isfinite(out)))
    assert bool(jnp.all(jnp.abs(jnp.sum(out, axis=-1) - 1.0) < 1e-4))
    assert bool(jnp.all(jnp.abs(jnp.sum(probs, axis=-1) - 1.0) < 1e-3))
    print("KERNEL_OK")
</pallas_src>

<mosaic_0001>
module attributes {stable_mosaic.version = 11 : i64} {
  func.func @_ln_kernel(%arg0: i32, %arg1: memref<16x32xf32, #tpu.memory_space<vmem>>, %arg2: memref<1x32xf32, #tpu.memory_space<vmem>>, %arg3: memref<1x32xf32, #tpu.memory_space<vmem>>, %arg4: memref<16x32xf32, #tpu.memory_space<vmem>>) attributes {dimension_semantics = [#tpu.dimension_semantics<parallel>], iteration_bounds = array<i64: 1>, scalar_prefetch = 0 : i64, scratch_operands = 0 : i64, tpu.core_type = #tpu.core_type<tc>, window_params = [{transform_indices = @transform_0, window_bounds = array<i64: 16, 32>}, {pipeline_mode = #tpu.pipeline_mode<synchronous>, transform_indices = @transform_1, window_bounds = array<i64: 1, 32>}, {pipeline_mode = #tpu.pipeline_mode<synchronous>, transform_indices = @transform_2, window_bounds = array<i64: 1, 32>}, {transform_indices = @transform_3, window_bounds = array<i64: 16, 32>}]} {
    %c0 = arith.constant 0 : index
    %c0_0 = arith.constant 0 : index
    %0 = vector.load %arg1[%c0, %c0_0] : memref<16x32xf32, #tpu.memory_space<vmem>>, vector<16x32xf32>
    %c0_1 = arith.constant 0 : index
    %c0_2 = arith.constant 0 : index
    %1 = vector.load %arg2[%c0_1, %c0_2] : memref<1x32xf32, #tpu.memory_space<vmem>>, vector<1x32xf32>
    %c0_3 = arith.constant 0 : index
    %c0_4 = arith.constant 0 : index
    %2 = vector.load %arg3[%c0_3, %c0_4] : memref<1x32xf32, #tpu.memory_space<vmem>>, vector<1x32xf32>
    %cst = arith.constant dense<0.000000e+00> : vector<16xf32>
    %3 = vector.multi_reduction <add>, %0, %cst [1] : vector<16x32xf32> to vector<16xf32>
    %4 = vector.shape_cast %3 : vector<16xf32> to vector<16x1xf32>
    %cst_5 = arith.constant 3.200000e+01 : f32
    %5 = vector.broadcast %cst_5 : f32 to vector<16x1xf32>
    %6 = arith.divf %4, %5 : vector<16x1xf32>
    %7 = vector.broadcast %6 : vector<16x1xf32> to vector<16x32xf32>
    %8 = arith.subf %0, %7 : vector<16x32xf32>
    %9 = arith.mulf %8, %8 : vector<16x32xf32>
    %cst_6 = arith.constant dense<0.000000e+00> : vector<16xf32>
    %10 = vector.multi_reduction <add>, %9, %cst_6 [1] : vector<16x32xf32> to vector<16xf32>
    %11 = vector.shape_cast %10 : vector<16xf32> to vector<16x1xf32>
    %cst_7 = arith.constant 3.200000e+01 : f32
    %12 = vector.broadcast %cst_7 : f32 to vector<16x1xf32>
    %13 = arith.divf %11, %12 : vector<16x1xf32>
    %cst_8 = arith.constant 9.99999996E-13 : f32
    %14 = vector.broadcast %cst_8 : f32 to vector<16x1xf32>
    %15 = arith.addf %13, %14 : vector<16x1xf32>
    %16 = math.rsqrt %15 : vector<16x1xf32>
    %17 = vector.broadcast %16 : vector<16x1xf32> to vector<16x32xf32>
    %18 = arith.mulf %8, %17 : vector<16x32xf32>
    %19 = vector.broadcast %1 : vector<1x32xf32> to vector<16x32xf32>
    %20 = arith.mulf %18, %19 : vector<16x32xf32>
    %21 = vector.broadcast %2 : vector<1x32xf32> to vector<16x32xf32>
    %22 = arith.addf %20, %21 : vector<16x32xf32>
    %c0_9 = arith.constant 0 : index
    %c0_10 = arith.constant 0 : index
    %23 = vector.load %arg4[%c0_9, %c0_10] : memref<16x32xf32, #tpu.memory_space<vmem>>, vector<16x32xf32>
    tpu.vector_store %arg4[%c0_9, %c0_10], %22 {strides = array<i32>} : memref<16x32xf32, #tpu.memory_space<vmem>>, vector<16x32xf32>,
    return
  }
  func.func @transform_0(%arg0: i32) -> (i32, i32) {
    %c0_i32 = arith.constant 0 : i32
    %c0_i32_0 = arith.constant 0 : i32
    return %arg0, %c0_i32 : i32, i32
  }
  func.func @transform_1(%arg0: i32) -> (i32, i32) {
    %c0_i32 = arith.constant 0 : i32
    %c0_i32_0 = arith.constant 0 : i32
    %c0_i32_1 = arith.constant 0 : i32
    return %c0_i32, %c0_i32_0 : i32, i32
  }
  func.func @transform_2(%arg0: i32) -> (i32, i32) {
    %c0_i32 = arith.constant 0 : i32
    %c0_i32_0 = arith.constant 0 : i32
    %c0_i32_1 = arith.constant 0 : i32
    return %c0_i32, %c0_i32_0 : i32, i32
  }
  func.func @transform_3(%arg0: i32) -> (i32, i32) {
    %c0_i32 = arith.constant 0 : i32
    %c0_i32_0 = arith.constant 0 : i32
    return %arg0, %c0_i32 : i32, i32
  }
}

</mosaic_0001>

<llo_original>
// kernel: tpu_custom_call.1
$region0: #{tpu_custom_call.1}
  #allocation0 [shape = 'u32[]', space=smem, size = 0x4, offset = 0x4, fixed_abs, tag = 'smem constant byte address 0x4 - core index']
  #allocation1 [shape = 'u32[144,128]{1,0:T(1,128)}', space=vmem, size = 0x12000, scoped, tag = 'internal scratch']
  %s0 = inlined_call_operand.hbm [shape: f32[16,32], index: 0, kind: input, shape index: {}]
  %s1 = inlined_call_operand.vmem [shape: f32[1,32], index: 1, kind: input, shape index: {}]
  %s2 = inlined_call_operand.vmem [shape: f32[1,32], index: 2, kind: input, shape index: {}]
  %s3 = inlined_call_operand.hbm [shape: f32[16,32], index: 3, kind: output, shape index: {}]
  %s4 = sld [smem:[#allocation0]]
  $region26: #{tpu_custom_call.1} parent=0
    _
  %s6 = ssub.s32 1, %s4
  %s7 = scalar_select 0, %s6, %s4
  $region1: #{tpu_custom_call.1} parent=0
    #allocation2 [shape = 'u8[8192]{0}', space=vmem, size = 0x2000, scoped, tag = 'input window, operand 0, single buffered']
    #allocation3 [shape = 's32[1]{0}', space=sflag, size = 0x4, scoped, tag = 'scoped memory for tpu_custom_call.1']
    #allocation4 [shape = 's32[1]{0}', space=sflag, size = 0x4, scoped, tag = 'scoped memory for tpu_custom_call.1']
    #allocation5 [shape = 'u8[8192]{0}', space=vmem, size = 0x2000, scoped, tag = 'output window, operand 0, single buffered']
    %8 = vsyncpa [#allocation3], 0
    %9 = vsyncpa [#allocation4], 0
    // Predicated region
    $region2: #{tpu_custom_call.1} parent=1 // pred_check
      _
    $region3: #{tpu_custom_call.1} parent=1 // pred_check_branch
      %11 = sbr.rel (0) target = $region5
    $region4: #{tpu_custom_call.1} parent=1 // pred_region
      %s13 = ssub.s32 256, 256
      %14 = vsyncadd [#allocation3], %s13
      %s15 = sshll.u32 [#allocation2], 4
      %s16 = int_to_ptr.vmem [resolvable:$true] %s15
      %21 = dma.hbm_to_vmem [thread:$0]  %s0, 256, %s16, [#allocation3], 128, 128, 8
    $region5: #{tpu_custom_call.1} parent=1 // pred_fallthru
      _
    // Predicated region
    $region6: #{tpu_custom_call.1} parent=1 // pred_check
      _
    $region7: #{tpu_custom_call.1} parent=1 // pred_check_branch
      %23 = sbr.rel (0) target = $region9
    $region8: #{tpu_custom_call.1} parent=1 // pred_region
      _
    $region9: #{tpu_custom_call.1} parent=1 // pred_fallthru
      _
    // Predicated region
    $region10: #{tpu_custom_call.1} parent=1 // pred_check
      _
    $region11: #{tpu_custom_call.1} parent=1 // pred_check_branch
      %25 = sbr.rel (0) target = $region13
    $region12: #{tpu_custom_call.1} parent=1 // pred_region
      _
    $region13: #{tpu_custom_call.1} parent=1 // pred_fallthru
      _
    // Predicated region
    $region14: #{tpu_custom_call.1} parent=1 // pred_check
      _
    $region15: #{tpu_custom_call.1} parent=1 // pred_check_branch
      %27 = sbr.rel (0) target = $region17
    $region16: #{tpu_custom_call.1} parent=1 // pred_region
      %28 = dma.done [#allocation3], 256
    $region17: #{tpu_custom_call.1} parent=1 // pred_fallthru
      _
    %v29 = vld [vmem:[#allocation2] sm:$0xff]
    %v30 = vld [vmem:[#allocation2 + $0x8] sm:$0xff]
    %v31 = vld [vmem:[%s1] sm:$0x1]
    %v32 = vld [vmem:[%s2] sm:$0x1]
    %vm33 = vcmask 261120
    %v34 = vsel %vm33, %v29, 0.0
    %35 = vadd.xlane.f32.xlu0 %v34
    %v36 = vpop.xlane.xlu0 %35
    %v37 = vsel %vm33, %v30, 0.0
    %38 = vadd.xlane.f32.xlu0 %v37
    %v39 = vpop.xlane.xlu0 %38
    %v40 = vrcp.pop 32.0
    %v41 = vmul.f32 %v36, %v40
    %v42 = vmul.f32 %v39, %v40
    %v43 = vsub.f32 %v29, %v41
    %v44 = vsub.f32 %v30, %v42
    %v45 = vmul.f32 %v43, %v43
    %v46 = vmul.f32 %v44, %v44
    %v47 = vsel %vm33, %v45, 0.0
    %48 = vadd.xlane.f32.xlu0 %v47
    %v49 = vpop.xlane.xlu0 %48
    %v50 = vsel %vm33, %v46, 0.0
    %51 = vadd.xlane.f32.xlu0 %v50
    %v52 = vpop.xlane.xlu0 %51
    %v53 = vmul.f32 %v49, %v40
    %v54 = vmul.f32 %v52, %v40
    %v55 = vadd.f32 %v53, 1e-12
    %v56 = vadd.f32 %v54, 1e-12
    %v57 = vrsqrt.pop %v55
    %v58 = vrsqrt.pop %v56
    %v59 = vmul.f32 %v43, %v57
    %v60 = vmul.f32 %v44, %v58
    %v62 = vlaneseq
    %v63 = vshrl.u32 %v62, 7
    %v64 = vsub.s32 0, %v63
    %v65 = vrot.slane %v31, %v64
    %v67 = vmul.f32 %v59, %v65
    %v68 = vmul.f32 %v60, %v65
    %v70 = vlaneseq
    %v71 = vshrl.u32 %v70, 7
    %v72 = vsub.s32 0, %v71
    %v73 = vrot.slane %v32, %v72
    %v75 = vadd.f32 %v67, %v73
    %v76 = vadd.f32 %v68, %v73
    %77 = vst.msk [vmem:[#allocation5] sm:$0xff] %vm33, %v75
    %78 = vst.msk [vmem:[#allocation5 + $0x8] sm:$0xff] %vm33, %v76
    // Predicated region
    $region18: #{tpu_custom_call.1} parent=1 // pred_check
      _
    $region19: #{tpu_custom_call.1} parent=1 // pred_check_branch
      %80 = sbr.rel (0) target = $region21
    $region20: #{tpu_custom_call.1} parent=1 // pred_region
      %s82 = ssub.s32 256, 256
      %83 = vsyncadd [#allocation4], %s82
      %s84 = sshll.u32 [#allocation5], 4
      %s85 = int_to_ptr.vmem [resolvable:$true] %s84
      %90 = dma.vmem_to_hbm [thread:$0]  %s85, 256, %s3, [#allocation4], 128, 128, 8
    $region21: #{tpu_custom_call.1} parent=1 // pred_fallthru
      _
    // Predicated region
    $region22: #{tpu_custom_call.1} parent=1 // pred_check
      _
    $region23: #{tpu_custom_call.1} parent=1 // pred_check_branch
      %92 = sbr.rel (0) target = $region25
    $region24: #{tpu_custom_call.1} parent=1 // pred_region
      %93 = dma.done [#allocation4], 256
    $region25: #{tpu_custom_call.1} parent=1 // pred_fallthru
      _
    %94 = vsyncpa [#allocation3], 1
    %95 = vsyncpa [#allocation4], 1

</llo_original>
